<compile_context>
chip_gen: v7x
topology: tpu7x:2x2x1
jax: 0.10.0
libtpu: 0.0.40
codegen_flags: <defaults>
</compile_context>

<pallas_src>
import math

import jax
import jax.numpy as jnp
from jax.experimental import pallas as pl
from jax.experimental.pallas import tpu as pltpu


def _cdiv(a, b):
    return -(-a // b)


def _round_up(x, m):
    return _cdiv(x, m) * m


# ------------------------------ kernels -------------------------------------


def _fc_relu_kernel_f32out(x_ref, w_ref, b_ref, o_ref):
    """relu(x @ w + b) with the f32 output block used directly as accumulator
    (it is resident across the K grid axis)."""
    k = pl.program_id(2)

    @pl.when(k == 0)
    def _():
        # Initialise the resident output tile with the broadcast bias so the
        # epilogue only needs the ReLU (bias added exactly once).
        o_ref[...] = jnp.broadcast_to(b_ref[...].astype(jnp.float32),
                                      o_ref.shape)

    o_ref[...] += jnp.dot(x_ref[...], w_ref[...],
                          preferred_element_type=jnp.float32)

    @pl.when(k == pl.num_programs(2) - 1)
    def _():
        o_ref[...] = jnp.maximum(o_ref[...], 0.0)


def _fc_relu_kernel_scratch(x_ref, w_ref, b_ref, o_ref, acc_ref):
    """Variant for non-f32 output dtypes: accumulate in an f32 VMEM scratch."""
    k = pl.program_id(2)

    @pl.when(k == 0)
    def _():
        acc_ref[...] = jnp.broadcast_to(b_ref[...].astype(jnp.float32),
                                        acc_ref.shape)

    acc_ref[...] += jnp.dot(x_ref[...], w_ref[...],
                            preferred_element_type=jnp.float32)

    @pl.when(k == pl.num_programs(2) - 1)
    def _():
        o_ref[...] = jnp.maximum(acc_ref[...], 0.0).astype(o_ref.dtype)


# --------------------------- tiling heuristics -------------------------------


def _vmem_budget_bytes():
    """Per-generation scoped-VMEM budget with headroom (v7x: 64 MiB/TC)."""
    try:
        cap = int(pltpu.get_tpu_info().vmem_capacity_bytes)
    except Exception:
        cap = 64 * 1024 * 1024  # conservative (v7x) fallback
    return max(32 * 1024 * 1024, min((cap * 3) // 4, 96 * 1024 * 1024))


def _pick_tile(dim, align, cap):
    """Tile size that is a multiple of `align` (or the full dim when smaller),
    at most `cap`, minimising padded waste (ties -> larger tile)."""
    if dim < align:
        return dim                      # block == full dim (legal)
    cap = max(align, (cap // align) * align)
    if dim <= cap:
        return _round_up(dim, align)    # single tile, waste < align
    best_t, best_waste = None, None
    nt0 = _cdiv(dim, cap)
    for nt in range(nt0, nt0 + 4):
        t = _round_up(_cdiv(dim, nt), align)
        waste = _cdiv(dim, t) * t - dim
        if best_waste is None or waste < best_waste or (
                waste == best_waste and t > best_t):
            best_t, best_waste = t, waste
    return best_t


# ------------------------------ wrapper --------------------------------------


def fc_layer(x, weight, bias, *, compute_dtype=None,
             tile_m=None, tile_n=None, tile_k=None):
    """ReLU(x @ weight.T + bias), matching FCLayer(in, out, 'relu', norm=None).

    x:      [..., in_features]
    weight: [out_features, in_features]  (PyTorch layout)
    bias:   [out_features]
    """
    orig_shape = x.shape
    n, k = weight.shape                      # out_features, in_features
    x2d = x.reshape(-1, k)
    m = x2d.shape[0]
    out_dtype = x.dtype

    # Optional low-precision operands for MXU peak rate (accumulation stays
    # f32 in-kernel).  Off by default to preserve f32 numerics.
    if compute_dtype is not None:
        x2d = x2d.astype(compute_dtype)
        weight = weight.astype(compute_dtype)
        bias = bias.astype(compute_dtype)

    # Transpose the weight once in the wrapper -> [K, N]: the MXU consumes the
    # contraction directly and the output N dim is lane-dense.
    w_kn = weight.T
    b2d = bias.reshape(1, n)

    in_item = jnp.dtype(x2d.dtype).itemsize
    out_item = jnp.dtype(out_dtype).itemsize
    f32_out = jnp.dtype(out_dtype) == jnp.dtype(jnp.float32)

    budget = _vmem_budget_bytes()

    # --- padding-aware M / N tiles -------------------------------------------
    tm = tile_m if tile_m is not None else _pick_tile(m, 8, 1024)
    tn = tile_n if tile_n is not None else _pick_tile(n, 128, 1024)

    # Give the two v7x TensorCores at least 2 blocks on a parallel axis when
    # the M x N grid would otherwise degenerate to a single block.
    if (tile_m is None and tile_n is None
            and _cdiv(m, tm) * _cdiv(n, tn) == 1):
        if m >= 256:
            tm = _round_up(_cdiv(m, 2), 8)
        elif n >= 256:
            tn = _round_up(_cdiv(n, 2), 128)

    # --- K tile: single full-K pass if it fits VMEM, else 128-multiple -------
    fixed = (2 * tm * tn * out_item
             + (0 if f32_out else tm * tn * 4)
             + 2 * tn * in_item)
    per_k = 2 * (tm + tn) * in_item          # double-buffered x + w per K elem
    tk_max = max(128, (budget - fixed) // per_k)
    if tile_k is not None:
        tk = tile_k
    elif k <= tk_max:
        tk = k                               # full-K block, zero K padding
    else:
        tk = _pick_tile(k, 128, int(tk_max))
    kp = _round_up(k, tk)

    # Only K is ever materialised/padded: zeros along K keep the contraction
    # exact.  M/N edge-block garbage only reaches discarded output elements.
    if kp != k:
        x2d = jnp.pad(x2d, ((0, 0), (0, kp - k)))
        w_kn = jnp.pad(w_kn, ((0, kp - k), (0, 0)))

    grid = (_cdiv(m, tm), _cdiv(n, tn), kp // tk)

    kernel = _fc_relu_kernel_f32out if f32_out else _fc_relu_kernel_scratch
    scratch = [] if f32_out else [pltpu.VMEM((tm, tn), jnp.float32)]

    # Truthful advisory cost: x re-streamed once per N tile, w once per M tile.
    cost = pl.CostEstimate(
        flops=2 * m * n * kp,
        transcendentals=0,
        bytes_accessed=int((m * kp * in_item) * grid[1]
                           + (kp * n * in_item) * grid[0]
                           + (n * in_item) * grid[0]
                           + m * n * out_item),
    )

    out = pl.pallas_call(
        kernel,
        out_shape=jax.ShapeDtypeStruct((m, n), out_dtype),
        grid_spec=pltpu.PrefetchScalarGridSpec(
            num_scalar_prefetch=0,
            grid=grid,
            in_specs=[
                pl.BlockSpec((tm, tk), lambda i, j, kk: (i, kk)),   # x  [M,K]
                pl.BlockSpec((tk, tn), lambda i, j, kk: (kk, j)),   # w  [K,N]
                pl.BlockSpec((1, tn), lambda i, j, kk: (0, j)),     # bias
            ],
            out_specs=pl.BlockSpec((tm, tn), lambda i, j, kk: (i, j)),
            scratch_shapes=scratch,
        ),
        compiler_params=pltpu.CompilerParams(
            dimension_semantics=("parallel", "parallel", "arbitrary"),
            vmem_limit_bytes=int(budget),
        ),
        cost_estimate=cost,
    )(x2d, w_kn, b2d)

    return out.reshape(*orig_shape[:-1], n)


# ------------------------------ init / test ----------------------------------


def init_fc_params(key, in_features, out_features, dtype=jnp.float32):
    """Deterministic init matching FCLayer.__init__ + init_weights_normal."""
    kw, kb = jax.random.split(key)
    # kaiming_normal_(a=0, nonlinearity='relu', mode='fan_in'):
    #   std = gain / sqrt(fan_in), gain = sqrt(2)
    std = math.sqrt(2.0 / in_features)
    weight = std * jax.random.normal(kw, (out_features, in_features), dtype)
    # nn.Linear default bias init: U(-1/sqrt(fan_in), 1/sqrt(fan_in))
    bound = 1.0 / math.sqrt(in_features)
    bias = jax.random.uniform(kb, (out_features,), dtype,
                              minval=-bound, maxval=bound)
    return weight, bias


if __name__ == "__main__":
    key = jax.random.PRNGKey(0)
    k_x, k_p = jax.random.split(key)

    # Small shapes consistent with the module: batch=2, seq=8, hidden 32 -> 64.
    batch, seq, in_features, out_features = 2, 8, 32, 64
    x = jax.random.normal(k_x, (batch, seq, in_features), jnp.float32)
    weight, bias = init_fc_params(k_p, in_features, out_features)

    out = jax.block_until_ready(fc_layer(x, weight, bias))
    ref = jnp.maximum(jnp.einsum("bsk,nk->bsn", x, weight) + bias, 0.0)
    assert out.shape == (batch, seq, out_features)
    assert jnp.allclose(out, ref, atol=1e-5, rtol=1e-5)

    # Non-tile-aligned shape: exercises the no-pad edge-block path
    # (M = 600 split across two tiles, N = 320 with tn = 384 overhang).
    k_x2, k_p2 = jax.random.split(jax.random.PRNGKey(1))
    x2 = jax.random.normal(k_x2, (3, 200, 384), jnp.float32)
    w2, b2 = init_fc_params(k_p2, 384, 320)
    out2 = jax.block_until_ready(fc_layer(x2, w2, b2))
    ref2 = jnp.maximum(jnp.einsum("bsk,nk->bsn", x2, w2) + b2, 0.0)
    assert out2.shape == (3, 200, 320)
    assert jnp.allclose(out2, ref2, atol=1e-4, rtol=1e-4)

    # Same problem with forced small tiles: exercises the multi-step K
    # reduction (accumulate-into-o_ref across k) and M/N multi-tile grid.
    out3 = jax.block_until_ready(
        fc_layer(x2, w2, b2, tile_m=256, tile_n=128, tile_k=128))
    assert jnp.allclose(out3, ref2, atol=1e-4, rtol=1e-4)

    print("KERNEL_OK")
</pallas_src>

<mosaic_0001>
module attributes {stable_mosaic.version = 11 : i64} {
  func.func @_fc_relu_kernel_f32out(%arg0: i32, %arg1: i32, %arg2: i32, %arg3: memref<16x32xf32, #tpu.memory_space<vmem>>, %arg4: memref<32x64xf32, #tpu.memory_space<vmem>>, %arg5: memref<1x64xf32, #tpu.memory_space<vmem>>, %arg6: memref<16x64xf32, #tpu.memory_space<vmem>>) attributes {dimension_semantics = [#tpu.dimension_semantics<parallel>, #tpu.dimension_semantics<parallel>, #tpu.dimension_semantics<arbitrary>], iteration_bounds = array<i64: 1, 1, 1>, scalar_prefetch = 0 : i64, scratch_operands = 0 : i64, tpu.core_type = #tpu.core_type<tc>, window_params = [{transform_indices = @transform_0, window_bounds = array<i64: 16, 32>}, {transform_indices = @transform_1, window_bounds = array<i64: 32, 64>}, {transform_indices = @transform_2, window_bounds = array<i64: 1, 64>}, {transform_indices = @transform_3, window_bounds = array<i64: 16, 64>}]} {
    %c0_i32 = arith.constant 0 : i32
    %0 = arith.cmpi eq, %arg2, %c0_i32 : i32
    %1 = arith.extui %0 : i1 to i32
    %c0_i32_0 = arith.constant 0 : i32
    %2 = arith.cmpi ne, %1, %c0_i32_0 : i32
    scf.if %2 {
      %c0_10 = arith.constant 0 : index
      %c0_11 = arith.constant 0 : index
      %12 = vector.load %arg5[%c0_10, %c0_11] : memref<1x64xf32, #tpu.memory_space<vmem>>, vector<1x64xf32>
      %13 = vector.shape_cast %12 : vector<1x64xf32> to vector<1x64xf32>
      %14 = vector.broadcast %13 : vector<1x64xf32> to vector<16x64xf32>
      %c0_12 = arith.constant 0 : index
      %c0_13 = arith.constant 0 : index
      %15 = vector.load %arg6[%c0_12, %c0_13] : memref<16x64xf32, #tpu.memory_space<vmem>>, vector<16x64xf32>
      tpu.vector_store %arg6[%c0_12, %c0_13], %14 {strides = array<i32>} : memref<16x64xf32, #tpu.memory_space<vmem>>, vector<16x64xf32>,
    } else {
    }
    %c0 = arith.constant 0 : index
    %c0_1 = arith.constant 0 : index
    %3 = vector.load %arg6[%c0, %c0_1] : memref<16x64xf32, #tpu.memory_space<vmem>>, vector<16x64xf32>
    %c0_2 = arith.constant 0 : index
    %c0_3 = arith.constant 0 : index
    %4 = vector.load %arg3[%c0_2, %c0_3] : memref<16x32xf32, #tpu.memory_space<vmem>>, vector<16x32xf32>
    %c0_4 = arith.constant 0 : index
    %c0_5 = arith.constant 0 : index
    %5 = vector.load %arg4[%c0_4, %c0_5] : memref<32x64xf32, #tpu.memory_space<vmem>>, vector<32x64xf32>
    %cst = arith.constant dense<0.000000e+00> : vector<16x64xf32>
    %6 = tpu.matmul %4, %5, %cst {dimension_numbers = #tpu.dot_dimension_numbers<[1], [0], [0], [1], [0, 0, 1, 1], [], []>} : vector<16x32xf32>, vector<32x64xf32>, vector<16x64xf32> -> vector<16x64xf32>
    %7 = arith.addf %3, %6 : vector<16x64xf32>
    %c0_6 = arith.constant 0 : index
    %c0_7 = arith.constant 0 : index
    %8 = vector.load %arg6[%c0_6, %c0_7] : memref<16x64xf32, #tpu.memory_space<vmem>>, vector<16x64xf32>
    tpu.vector_store %arg6[%c0_6, %c0_7], %7 {strides = array<i32>} : memref<16x64xf32, #tpu.memory_space<vmem>>, vector<16x64xf32>,
    %c0_i32_8 = arith.constant 0 : i32
    %9 = arith.cmpi eq, %arg2, %c0_i32_8 : i32
    %10 = arith.extui %9 : i1 to i32
    %c0_i32_9 = arith.constant 0 : i32
    %11 = arith.cmpi ne, %10, %c0_i32_9 : i32
    scf.if %11 {
      %c0_10 = arith.constant 0 : index
      %c0_11 = arith.constant 0 : index
      %12 = vector.load %arg6[%c0_10, %c0_11] : memref<16x64xf32, #tpu.memory_space<vmem>>, vector<16x64xf32>
      %cst_12 = arith.constant 0.000000e+00 : f32
      %13 = vector.broadcast %cst_12 : f32 to vector<16x64xf32>
      %14 = arith.maximumf %12, %13 : vector<16x64xf32>
      %c0_13 = arith.constant 0 : index
      %c0_14 = arith.constant 0 : index
      %15 = vector.load %arg6[%c0_13, %c0_14] : memref<16x64xf32, #tpu.memory_space<vmem>>, vector<16x64xf32>
      tpu.vector_store %arg6[%c0_13, %c0_14], %14 {strides = array<i32>} : memref<16x64xf32, #tpu.memory_space<vmem>>, vector<16x64xf32>,
    } else {
    }
    return
  }
  func.func @transform_0(%arg0: i32, %arg1: i32, %arg2: i32) -> (i32, i32) {
    %c0_i32 = arith.constant 0 : i32
    return %arg0, %arg2 : i32, i32
  }
  func.func @transform_1(%arg0: i32, %arg1: i32, %arg2: i32) -> (i32, i32) {
    %c0_i32 = arith.constant 0 : i32
    return %arg2, %arg1 : i32, i32
  }
  func.func @transform_2(%arg0: i32, %arg1: i32, %arg2: i32) -> (i32, i32) {
    %c0_i32 = arith.constant 0 : i32
    %c0_i32_0 = arith.constant 0 : i32
    return %c0_i32, %arg1 : i32, i32
  }
  func.func @transform_3(%arg0: i32, %arg1: i32, %arg2: i32) -> (i32, i32) {
    %c0_i32 = arith.constant 0 : i32
    return %arg0, %arg1 : i32, i32
  }
}

</mosaic_0001>

<llo_original>
// kernel: tpu_custom_call.1
$region0: #{tpu_custom_call.1}
  #allocation0 [shape = 'u32[]', space=smem, size = 0x4, offset = 0x4, fixed_abs, tag = 'smem constant byte address 0x4 - core index']
  #allocation1 [shape = 'u32[144,128]{1,0:T(1,128)}', space=vmem, size = 0x12000, scoped, tag = 'internal scratch']
  %s0 = inlined_call_operand.hbm [shape: f32[16,32], index: 0, kind: input, shape index: {}]
  %s1 = inlined_call_operand.hbm [shape: f32[32,64], index: 1, kind: input, shape index: {}]
  %s2 = inlined_call_operand.vmem [shape: f32[1,64], index: 2, kind: input, shape index: {}]
  %s3 = inlined_call_operand.hbm [shape: f32[16,64], index: 3, kind: output, shape index: {}]
  %s4 = sld [smem:[#allocation0]]
  $region38: #{tpu_custom_call.1} parent=0
    _
  %s6 = ssub.s32 1, %s4
  %s7 = scalar_select 0, %s6, %s4
  $region1: #{tpu_custom_call.1} parent=0
    #allocation2 [shape = 'u8[8192]{0}', space=vmem, size = 0x2000, scoped, tag = 'input window, operand 0, single buffered']
    #allocation3 [shape = 's32[1]{0}', space=sflag, size = 0x4, scoped, tag = 'scoped memory for tpu_custom_call.1']
    #allocation4 [shape = 's32[1]{0}', space=sflag, size = 0x4, scoped, tag = 'scoped memory for tpu_custom_call.1']
    #allocation5 [shape = 'u8[16384]{0}', space=vmem, size = 0x4000, scoped, tag = 'input window, operand 1, single buffered']
    #allocation6 [shape = 's32[1]{0}', space=sflag, size = 0x4, scoped, tag = 'scoped memory for tpu_custom_call.1']
    #allocation7 [shape = 'u8[8192]{0}', space=vmem, size = 0x2000, scoped, tag = 'output window, operand 0, single buffered']
    %8 = vsyncpa [#allocation3], 0
    %9 = vsyncpa [#allocation6], 0
    %10 = vsyncpa [#allocation4], 0
    // Predicated region
    $region2: #{tpu_custom_call.1} parent=1 // pred_check
      _
    $region3: #{tpu_custom_call.1} parent=1 // pred_check_branch
      %12 = sbr.rel (0) target = $region5
    $region4: #{tpu_custom_call.1} parent=1 // pred_region
      %s14 = ssub.s32 256, 256
      %15 = vsyncadd [#allocation3], %s14
      %s16 = sshll.u32 [#allocation2], 4
      %s17 = int_to_ptr.vmem [resolvable:$true] %s16
      %22 = dma.hbm_to_vmem [thread:$0]  %s0, 256, %s17, [#allocation3], 128, 128, 8
    $region5: #{tpu_custom_call.1} parent=1 // pred_fallthru
      _
    // Predicated region
    $region6: #{tpu_custom_call.1} parent=1 // pred_check
      _
    $region7: #{tpu_custom_call.1} parent=1 // pred_check_branch
      %24 = sbr.rel (0) target = $region9
    $region8: #{tpu_custom_call.1} parent=1 // pred_region
      %s26 = ssub.s32 512, 512
      %27 = vsyncadd [#allocation6], %s26
      %s28 = sshll.u32 [#allocation5], 4
      %s29 = int_to_ptr.vmem [resolvable:$true] %s28
      %34 = dma.hbm_to_vmem [thread:$0]  %s1, 512, %s29, [#allocation6], 128, 128, 8
    $region9: #{tpu_custom_call.1} parent=1 // pred_fallthru
      _
    // Predicated region
    $region10: #{tpu_custom_call.1} parent=1 // pred_check
      _
    $region11: #{tpu_custom_call.1} parent=1 // pred_check_branch
      %36 = sbr.rel (0) target = $region13
    $region12: #{tpu_custom_call.1} parent=1 // pred_region
      _
    $region13: #{tpu_custom_call.1} parent=1 // pred_fallthru
      _
    // Predicated region
    $region14: #{tpu_custom_call.1} parent=1 // pred_check
      _
    $region15: #{tpu_custom_call.1} parent=1 // pred_check_branch
      %38 = sbr.rel (0) target = $region17
    $region16: #{tpu_custom_call.1} parent=1 // pred_region
      %39 = dma.done [#allocation3], 256
    $region17: #{tpu_custom_call.1} parent=1 // pred_fallthru
      _
    // Predicated region
    $region18: #{tpu_custom_call.1} parent=1 // pred_check
      _
    $region19: #{tpu_custom_call.1} parent=1 // pred_check_branch
      %41 = sbr.rel (0) target = $region21
    $region20: #{tpu_custom_call.1} parent=1 // pred_region
      %42 = dma.done [#allocation6], 512
    $region21: #{tpu_custom_call.1} parent=1 // pred_fallthru
      _
    %p43 = scmp.eq.s32.totalorder 0, 0
    // Predicated region
    $region22: #{tpu_custom_call.1} parent=1 // pred_check
      %p44 = pneg %p43
    $region23: #{tpu_custom_call.1} parent=1 // pred_check_branch
      %46 = sbr.rel (%p44) target = $region25
    $region24: #{tpu_custom_call.1} parent=1 // pred_region
      %v47 = vld [vmem:[%s2] sm:$0x1]
      %v49 = vlaneseq
      %v50 = vshrl.u32 %v49, 7
      %v51 = vsub.s32 0, %v50
      %v52 = vrot.slane %v47, %v51
      %vm54 = vcmask 523264
      %55 = vst.msk [vmem:[#allocation7] sm:$0xff] %vm54, %v52
      %56 = vst.msk [vmem:[#allocation7 + $0x8] sm:$0xff] %vm54, %v52
    $region25: #{tpu_custom_call.1} parent=1 // pred_fallthru
      _
    %v57 = vld [vmem:[#allocation7] sm:$0xff]
    %v58 = vld [vmem:[#allocation7 + $0x8] sm:$0xff]
    %v59 = vld [vmem:[#allocation2] sm:$0xff]
    %v60 = vld [vmem:[#allocation2 + $0x8] sm:$0xff]
    %v61 = vld [vmem:[#allocation5] sm:$0xff]
    %v62 = vld [vmem:[#allocation5 + $0x8] sm:$0xff]
    %v63 = vld [vmem:[#allocation5 + $0x10] sm:$0xff]
    %v64 = vld [vmem:[#allocation5 + $0x18] sm:$0xff]
    %vm65 = vcmask 261120
    %v67 = vsel %vm65, %v59, 0
    %v70 = vsel %vm65, %v60, 0
    %72 = vmatprep.subr.mxu0 0.0
    %73 = vmatpush1.msra.mxu0 %v61
    %74 = vmatprep.subr.mxu0 0.0
    %75 = vmatpush1.msra.mxu0 %v62
    %76 = vmatprep.subr.mxu0 0.0
    %77 = vmatpush1.msra.mxu0 %v63
    %78 = vmatprep.subr.mxu0 0.0
    %79 = vmatpush1.msra.mxu0 %v64
    %80 = vmatprep.subr.mxu0 0.0
    %81 = vmatpush1.msra.mxu0 0.0
    %82 = vmatprep.subr.mxu0 0.0
    %83 = vmatpush1.msra.mxu0 0.0
    %84 = vmatprep.subr.mxu0 0.0
    %85 = vmatpush1.msra.mxu0 0.0
    %86 = vmatprep.subr.mxu0 0.0
    %87 = vmatpush1.msra.mxu0 0.0
    %88 = vmatprep.subr.mxu0 0.0
    %89 = vmatpush1.msra.mxu0 0.0
    %90 = vmatprep.subr.mxu0 0.0
    %91 = vmatpush1.msra.mxu0 0.0
    %92 = vmatprep.subr.mxu0 0.0
    %93 = vmatpush1.msra.mxu0 0.0
    %94 = vmatprep.subr.mxu0 0.0
    %95 = vmatpush1.msra.mxu0 0.0
    %96 = vmatprep.subr.mxu0 0.0
    %97 = vmatpush1.msra.mxu0 0.0
    %98 = vmatprep.subr.mxu0 0.0
    %99 = vmatpush1.msra.mxu0 0.0
    %100 = vmatprep.subr.mxu0 0.0
    %101 = vmatpush1.msra.mxu0 0.0
    %102 = vmatprep.subr.mxu0 0.0
    %103 = vmatpush1.msra.mxu0 0.0
    %104 = vmatprep.subr.mxu0 0.0
    %105 = vmatpush1.msra.mxu0 0.0
    %106 = vmatprep.subr.mxu0 0.0
    %107 = vmatpush1.msra.mxu0 0.0
    %108 = vmatprep.subr.mxu0 0.0
    %109 = vmatpush1.msra.mxu0 0.0
    %110 = vmatprep.subr.mxu0 0.0
    %111 = vmatpush1.msra.mxu0 0.0
    %112 = vmatprep.subr.mxu0 0.0
    %113 = vmatpush1.msra.mxu0 0.0
    %114 = vmatprep.subr.mxu0 0.0
    %115 = vmatpush1.msra.mxu0 0.0
    %116 = vmatprep.subr.mxu0 0.0
    %117 = vmatpush1.msra.mxu0 0.0
    %118 = vmatprep.subr.mxu0 0.0
    %119 = vmatpush1.msra.mxu0 0.0
    %120 = vmatprep.subr.mxu0 0.0
    %121 = vmatpush1.msra.mxu0 0.0
    %122 = vmatprep.subr.mxu0 0.0
    %123 = vmatpush1.msra.mxu0 0.0
    %124 = vmatprep.subr.mxu0 0.0
    %125 = vmatpush1.msra.mxu0 0.0
    %126 = vmatprep.subr.mxu0 0.0
    %127 = vmatpush1.msra.mxu0 0.0
    %128 = vmatprep.subr.mxu0 0.0
    %129 = vmatpush1.msra.mxu0 0.0
    %130 = vmatprep.subr.mxu0 0.0
    %131 = vmatpush1.msra.mxu0 0.0
    %132 = vmatprep.subr.mxu0 0.0
    %133 = vmatpush1.msra.mxu0 0.0
    %134 = vmatprep.subr.mxu0 0.0
    %135 = vmatpush1.msra.mxu0 0.0
    %136 = vmatprep.mubr.f32.mxu0 0.0
    %137 = vmatmul.mubr.f32.gmra.mrb[0].mxu0 %v67
    %v138 = vpop.f32.mrb[0].mxu0
    %v139 = vadd.f32 0.0, %v138
    %v140 = vpop.f32.mrb[0].mxu0
    %141 = vmatprep.mubr.f32.mxu0 0.0
    %142 = vmatmul.mubr.f32.gmra.mrb[0].mxu0 %v70
    %v143 = vpop.f32.mrb[0].mxu0
    %v144 = vadd.f32 0.0, %v143
    %v145 = vpop.f32.mrb[0].mxu0
    %146 = vdwg.mxu0
    %v147 = vadd.f32 %v57, %v139
    %v148 = vadd.f32 %v58, %v144
    %vm149 = vcmask 523264
    %150 = vst.msk [vmem:[#allocation7] sm:$0xff] %vm149, %v147
    %151 = vst.msk [vmem:[#allocation7 + $0x8] sm:$0xff] %vm149, %v148
    // Predicated region
    $region26: #{tpu_custom_call.1} parent=1 // pred_check
      %p152 = pneg %p43
    $region27: #{tpu_custom_call.1} parent=1 // pred_check_branch
      %154 = sbr.rel (%p152) target = $region29
    $region28: #{tpu_custom_call.1} parent=1 // pred_region
      %v155 = vld [vmem:[#allocation7] sm:$0xff]
      %v156 = vld [vmem:[#allocation7 + $0x8] sm:$0xff]
      %v157 = vmax.f32 %v155, 0.0
      %v158 = vmax.f32 %v156, 0.0
      %159 = vst.msk [vmem:[#allocation7] sm:$0xff] %vm149, %v157
      %160 = vst.msk [vmem:[#allocation7 + $0x8] sm:$0xff] %vm149, %v158
    $region29: #{tpu_custom_call.1} parent=1 // pred_fallthru
      _
    // Predicated region
    $region30: #{tpu_custom_call.1} parent=1 // pred_check
      _
    $region31: #{tpu_custom_call.1} parent=1 // pred_check_branch
      %162 = sbr.rel (0) target = $region33
    $region32: #{tpu_custom_call.1} parent=1 // pred_region
      %s164 = ssub.s32 256, 256
      %165 = vsyncadd [#allocation4], %s164
      %s166 = sshll.u32 [#allocation7], 4
      %s167 = int_to_ptr.vmem [resolvable:$true] %s166
      %172 = dma.vmem_to_hbm [thread:$0]  %s167, 256, %s3, [#allocation4], 128, 128, 8
    $region33: #{tpu_custom_call.1} parent=1 // pred_fallthru
      _
    // Predicated region
    $region34: #{tpu_custom_call.1} parent=1 // pred_check
      _
    $region35: #{tpu_custom_call.1} parent=1 // pred_check_branch
      %174 = sbr.rel (0) target = $region37
    $region36: #{tpu_custom_call.1} parent=1 // pred_region
      %175 = dma.done [#allocation4], 256
    $region37: #{tpu_custom_call.1} parent=1 // pred_fallthru
      _
    %176 = vsyncpa [#allocation3], 1
    %177 = vsyncpa [#allocation6], 1
    %178 = vsyncpa [#allocation4], 1

</llo_original>
